<compile_context>
chip_gen: v6e
topology: v6e:2x2x1
jax: 0.10.0
libtpu: 0.0.40
codegen_flags: <defaults>
</compile_context>

<pallas_src>
import functools

import jax
import jax.numpy as jnp
from jax.experimental import pallas as pl
from jax.experimental.pallas import tpu as pltpu


def _round_up(n, m):
    return ((n + m - 1) // m) * m


def ae_kernel(x_ref, w_ref, b_ref, enc_ref, dec_ref):
    """Autoencoder forward for one batch tile, feature-major layout.

    x_ref  : (19, TB)    io_dtype      input features x batch tile (batch on lanes)
    w_ref  : (4, 32, 32) compute_dtype zero-padded (out, in) weights of the 4 Linears
    b_ref  : (4, 32, 1)  float32       zero-padded biases
    enc_ref: (8,  TB)    out_dtype     encoder output
    dec_ref: (19, TB)    out_dtype     decoder output
    """
    cdt = w_ref.dtype
    w = w_ref[...]                       # tiny, VMEM-resident slab
    b = b_ref[...]

    x = x_ref[...].astype(cdt)           # no-op when io_dtype == compute_dtype

    # Layer 1: Linear(19,16) + ReLU — true-shape weights, f32 accumulation.
    h1 = jnp.dot(w[0, :16, :19], x, preferred_element_type=jnp.float32) + b[0, :16]
    h1 = jnp.maximum(h1, 0.0).astype(cdt)

    # Layer 2: Linear(16,8) -> encoder output.
    enc = jnp.dot(w[1, :8, :16], h1, preferred_element_type=jnp.float32) + b[1, :8]
    enc_ref[...] = enc.astype(enc_ref.dtype)          # lane-dense store

    # Layer 3: Linear(8,16) + ReLU.
    h2 = jnp.dot(w[2, :16, :8], enc.astype(cdt),
                 preferred_element_type=jnp.float32) + b[2, :16]
    h2 = jnp.maximum(h2, 0.0).astype(cdt)

    # Layer 4: Linear(16,19) + Tanh -> decoder output.
    dec = jnp.tanh(jnp.dot(w[3, :19, :16], h2,
                           preferred_element_type=jnp.float32) + b[3, :19])
    dec_ref[...] = dec.astype(dec_ref.dtype)           # lane-dense store


def _pack_params(params, compute_dtype):
    """Pack the 4 (out,in) weights / (out,) biases into zero-padded slabs."""
    w_slab = jnp.zeros((4, 32, 32), compute_dtype)
    b_slab = jnp.zeros((4, 32, 1), jnp.float32)
    for i, (wn, bn) in enumerate((("w1", "b1"), ("w2", "b2"),
                                  ("w3", "b3"), ("w4", "b4"))):
        w = params[wn].astype(compute_dtype)   # (out, in) -- PyTorch layout
        bb = params[bn].astype(jnp.float32)    # (out,)
        o, k = w.shape
        w_slab = w_slab.at[i, :o, :k].set(w)
        b_slab = b_slab.at[i, :o, 0].set(bb)
    return w_slab, b_slab


@functools.partial(jax.jit, static_argnames=("block_b", "io_dtype", "compute_dtype",
                                              "out_dtype", "feature_major_output"))
def autoencoder_forward(x, params, *, block_b=16384,
                        io_dtype=jnp.bfloat16, compute_dtype=jnp.bfloat16,
                        out_dtype=jnp.bfloat16, feature_major_output=False):
    """x: (B, 19). params: PyTorch-layout weights. Returns (encode, decode).

    Default return layout matches the PyTorch module: encode (B, 8),
    decode (B, 19). Set feature_major_output=True to get (8, B) / (19, B)
    and skip the post-kernel transposes when the consumer can fuse them.
    """
    B, f = x.shape
    assert f == 19, "autoencoder expects 19 input features"

    w_slab, b_slab = _pack_params(params, compute_dtype)

    # Batch tile: multiple of 128 (lane width). Big tiles amortize per-step cost.
    tb = min(_round_up(block_b, 128), _round_up(B, 128))
    b_pad = _round_up(B, tb)

    # One-time fused cast + layout flip to feature-major (batch on lanes).
    xt = x.astype(io_dtype).T                           # (19, B)
    if b_pad != B:
        xt = jnp.pad(xt, ((0, 0), (0, b_pad - B)))

    grid = (b_pad // tb,)
    enc_t, dec_t = pl.pallas_call(
        ae_kernel,
        out_shape=(
            jax.ShapeDtypeStruct((8, b_pad), out_dtype),
            jax.ShapeDtypeStruct((19, b_pad), out_dtype),
        ),
        grid_spec=pltpu.PrefetchScalarGridSpec(
            num_scalar_prefetch=0,
            grid=grid,
            in_specs=[
                pl.BlockSpec((19, tb), lambda i: (0, i)),        # streamed x tile
                pl.BlockSpec((4, 32, 32), lambda i: (0, 0, 0)),  # VMEM-resident weights
                pl.BlockSpec((4, 32, 1), lambda i: (0, 0, 0)),   # VMEM-resident biases
            ],
            out_specs=(
                pl.BlockSpec((8, tb), lambda i: (0, i)),         # lane-dense encode
                pl.BlockSpec((19, tb), lambda i: (0, i)),        # lane-dense decode
            ),
        ),
        compiler_params=pltpu.CompilerParams(
            dimension_semantics=("parallel",),      # dual-TC on v7x
            vmem_limit_bytes=48 * 1024 * 1024,      # v5e default is only 16 MiB
        ),
    )(xt, w_slab, b_slab)

    enc_t = enc_t[:, :B]                            # drop batch padding
    dec_t = dec_t[:, :B]
    if feature_major_output:
        return enc_t, dec_t                         # (8, B), (19, B)
    return enc_t.T, dec_t.T                         # (B, 8), (B, 19)


def init_params(key):
    """PyTorch-style init: weight (out, in), bias (out,), U(-1/sqrt(fan_in), +)."""
    def linear(k, fan_in, fan_out):
        kw, kb = jax.random.split(k)
        bound = 1.0 / (fan_in ** 0.5)
        w = jax.random.uniform(kw, (fan_out, fan_in), jnp.float32, -bound, bound)
        b = jax.random.uniform(kb, (fan_out,), jnp.float32, -bound, bound)
        return w, b

    k1, k2, k3, k4 = jax.random.split(key, 4)
    w1, b1 = linear(k1, 19, 16)
    w2, b2 = linear(k2, 16, 8)
    w3, b3 = linear(k3, 8, 16)
    w4, b4 = linear(k4, 16, 19)
    return {"w1": w1, "b1": b1, "w2": w2, "b2": b2,
            "w3": w3, "b3": b3, "w4": w4, "b4": b4}


def reference_forward(x, p):
    h1 = jnp.maximum(x @ p["w1"].T + p["b1"], 0.0)
    enc = h1 @ p["w2"].T + p["b2"]
    h2 = jnp.maximum(enc @ p["w3"].T + p["b3"], 0.0)
    dec = jnp.tanh(h2 @ p["w4"].T + p["b4"])
    return enc, dec


if __name__ == "__main__":
    key = jax.random.PRNGKey(0)
    kx, kx2, kp = jax.random.split(key, 3)
    params = init_params(kp)

    # 1) Exact f32 configuration (single grid step) — tight tolerance.
    B = 8
    x = jax.random.normal(kx, (B, 19), jnp.float32)
    enc, dec = autoencoder_forward(x, params, io_dtype=jnp.float32,
                                   compute_dtype=jnp.float32, out_dtype=jnp.float32)
    enc = jax.block_until_ready(enc)
    dec = jax.block_until_ready(dec)
    enc_ref, dec_ref = reference_forward(x, params)
    assert enc.shape == (B, 8) and dec.shape == (B, 19)
    assert jnp.allclose(enc, enc_ref, atol=1e-4, rtol=1e-4)
    assert jnp.allclose(dec, dec_ref, atol=1e-4, rtol=1e-4)

    # 2) Production defaults (bf16 transport / operands / outputs), multiple
    #    pipelined grid steps, non-multiple-of-128 batch — loose tolerance.
    B2 = 300
    x2 = jax.random.normal(kx2, (B2, 19), jnp.float32)
    enc2, dec2 = autoencoder_forward(x2, params, block_b=128)
    enc2 = jax.block_until_ready(enc2)
    dec2 = jax.block_until_ready(dec2)
    enc2_ref, dec2_ref = reference_forward(x2, params)
    assert enc2.shape == (B2, 8) and dec2.shape == (B2, 19)
    assert jnp.allclose(enc2.astype(jnp.float32), enc2_ref, atol=1e-1, rtol=1e-1)
    assert jnp.allclose(dec2.astype(jnp.float32), dec2_ref, atol=1e-1, rtol=1e-1)

    # 3) Feature-major output path (consumer keeps the kernel's lane-dense layout).
    enc3, dec3 = autoencoder_forward(x2, params, feature_major_output=True)
    enc3 = jax.block_until_ready(enc3)
    dec3 = jax.block_until_ready(dec3)
    assert enc3.shape == (8, B2) and dec3.shape == (19, B2)
    assert jnp.allclose(enc3.T.astype(jnp.float32), enc2_ref, atol=1e-1, rtol=1e-1)
    assert jnp.allclose(dec3.T.astype(jnp.float32), dec2_ref, atol=1e-1, rtol=1e-1)

    print("KERNEL_OK")
</pallas_src>

<mosaic_0001>
module attributes {stable_mosaic.version = 11 : i64} {
  func.func @ae_kernel(%arg0: i32, %arg1: memref<19x128xf32, #tpu.memory_space<vmem>>, %arg2: memref<4x32x32xf32, #tpu.memory_space<vmem>>, %arg3: memref<4x32x1xf32, #tpu.memory_space<vmem>>, %arg4: memref<8x128xf32, #tpu.memory_space<vmem>>, %arg5: memref<19x128xf32, #tpu.memory_space<vmem>>) attributes {dimension_semantics = [#tpu.dimension_semantics<parallel>], iteration_bounds = array<i64: 1>, scalar_prefetch = 0 : i64, scratch_operands = 0 : i64, tpu.core_type = #tpu.core_type<tc>, window_params = [{transform_indices = @transform_0, window_bounds = array<i64: 19, 128>}, {pipeline_mode = #tpu.pipeline_mode<synchronous>, transform_indices = @transform_1, window_bounds = array<i64: 4, 32, 32>}, {pipeline_mode = #tpu.pipeline_mode<synchronous>, transform_indices = @transform_2, window_bounds = array<i64: 4, 32, 1>}, {transform_indices = @transform_3, window_bounds = array<i64: 8, 128>}, {transform_indices = @transform_4, window_bounds = array<i64: 19, 128>}]} {
    %c0 = arith.constant 0 : index
    %c0_0 = arith.constant 0 : index
    %c0_1 = arith.constant 0 : index
    %0 = vector.load %arg2[%c0, %c0_0, %c0_1] : memref<4x32x32xf32, #tpu.memory_space<vmem>>, vector<4x32x32xf32>
    %c0_2 = arith.constant 0 : index
    %c0_3 = arith.constant 0 : index
    %c0_4 = arith.constant 0 : index
    %1 = vector.load %arg3[%c0_2, %c0_3, %c0_4] : memref<4x32x1xf32, #tpu.memory_space<vmem>>, vector<4x32x1xf32>
    %c0_5 = arith.constant 0 : index
    %c0_6 = arith.constant 0 : index
    %2 = vector.load %arg1[%c0_5, %c0_6] : memref<19x128xf32, #tpu.memory_space<vmem>>, vector<19x128xf32>
    %3 = vector.extract_strided_slice %0 {offsets = [0, 0, 0], sizes = [1, 16, 19], strides = [1, 1, 1]} : vector<4x32x32xf32> to vector<1x16x19xf32>
    %4 = vector.shape_cast %3 : vector<1x16x19xf32> to vector<16x19xf32>
    %cst = arith.constant dense<0.000000e+00> : vector<16x128xf32>
    %5 = tpu.matmul %4, %2, %cst {dimension_numbers = #tpu.dot_dimension_numbers<[1], [0], [0], [1], [0, 0, 1, 1], [], []>} : vector<16x19xf32>, vector<19x128xf32>, vector<16x128xf32> -> vector<16x128xf32>
    %6 = vector.extract_strided_slice %1 {offsets = [0, 0, 0], sizes = [1, 16, 1], strides = [1, 1, 1]} : vector<4x32x1xf32> to vector<1x16x1xf32>
    %7 = vector.shape_cast %6 : vector<1x16x1xf32> to vector<16x1xf32>
    %8 = vector.broadcast %7 : vector<16x1xf32> to vector<16x128xf32>
    %9 = arith.addf %5, %8 : vector<16x128xf32>
    %cst_7 = arith.constant 0.000000e+00 : f32
    %10 = vector.broadcast %cst_7 : f32 to vector<16x128xf32>
    %11 = arith.maximumf %9, %10 : vector<16x128xf32>
    %12 = vector.extract_strided_slice %0 {offsets = [1, 0, 0], sizes = [1, 8, 16], strides = [1, 1, 1]} : vector<4x32x32xf32> to vector<1x8x16xf32>
    %13 = vector.shape_cast %12 : vector<1x8x16xf32> to vector<8x16xf32>
    %cst_8 = arith.constant dense<0.000000e+00> : vector<8x128xf32>
    %14 = tpu.matmul %13, %11, %cst_8 {dimension_numbers = #tpu.dot_dimension_numbers<[1], [0], [0], [1], [0, 0, 1, 1], [], []>} : vector<8x16xf32>, vector<16x128xf32>, vector<8x128xf32> -> vector<8x128xf32>
    %15 = vector.extract_strided_slice %1 {offsets = [1, 0, 0], sizes = [1, 8, 1], strides = [1, 1, 1]} : vector<4x32x1xf32> to vector<1x8x1xf32>
    %16 = vector.shape_cast %15 : vector<1x8x1xf32> to vector<8x1xf32>
    %17 = vector.broadcast %16 : vector<8x1xf32> to vector<8x128xf32>
    %18 = arith.addf %14, %17 : vector<8x128xf32>
    %c0_9 = arith.constant 0 : index
    %c0_10 = arith.constant 0 : index
    %19 = vector.load %arg4[%c0_9, %c0_10] : memref<8x128xf32, #tpu.memory_space<vmem>>, vector<8x128xf32>
    tpu.vector_store %arg4[%c0_9, %c0_10], %18 {strides = array<i32>} : memref<8x128xf32, #tpu.memory_space<vmem>>, vector<8x128xf32>,
    %20 = vector.extract_strided_slice %0 {offsets = [2, 0, 0], sizes = [1, 16, 8], strides = [1, 1, 1]} : vector<4x32x32xf32> to vector<1x16x8xf32>
    %21 = vector.shape_cast %20 : vector<1x16x8xf32> to vector<16x8xf32>
    %cst_11 = arith.constant dense<0.000000e+00> : vector<16x128xf32>
    %22 = tpu.matmul %21, %18, %cst_11 {dimension_numbers = #tpu.dot_dimension_numbers<[1], [0], [0], [1], [0, 0, 1, 1], [], []>} : vector<16x8xf32>, vector<8x128xf32>, vector<16x128xf32> -> vector<16x128xf32>
    %23 = vector.extract_strided_slice %1 {offsets = [2, 0, 0], sizes = [1, 16, 1], strides = [1, 1, 1]} : vector<4x32x1xf32> to vector<1x16x1xf32>
    %24 = vector.shape_cast %23 : vector<1x16x1xf32> to vector<16x1xf32>
    %25 = vector.broadcast %24 : vector<16x1xf32> to vector<16x128xf32>
    %26 = arith.addf %22, %25 : vector<16x128xf32>
    %cst_12 = arith.constant 0.000000e+00 : f32
    %27 = vector.broadcast %cst_12 : f32 to vector<16x128xf32>
    %28 = arith.maximumf %26, %27 : vector<16x128xf32>
    %29 = vector.extract_strided_slice %0 {offsets = [3, 0, 0], sizes = [1, 19, 16], strides = [1, 1, 1]} : vector<4x32x32xf32> to vector<1x19x16xf32>
    %30 = vector.shape_cast %29 : vector<1x19x16xf32> to vector<19x16xf32>
    %cst_13 = arith.constant dense<0.000000e+00> : vector<19x128xf32>
    %31 = tpu.matmul %30, %28, %cst_13 {dimension_numbers = #tpu.dot_dimension_numbers<[1], [0], [0], [1], [0, 0, 1, 1], [], []>} : vector<19x16xf32>, vector<16x128xf32>, vector<19x128xf32> -> vector<19x128xf32>
    %32 = vector.extract_strided_slice %1 {offsets = [3, 0, 0], sizes = [1, 19, 1], strides = [1, 1, 1]} : vector<4x32x1xf32> to vector<1x19x1xf32>
    %33 = vector.shape_cast %32 : vector<1x19x1xf32> to vector<19x1xf32>
    %34 = vector.broadcast %33 : vector<19x1xf32> to vector<19x128xf32>
    %35 = arith.addf %31, %34 : vector<19x128xf32>
    %36 = math.tanh %35 : vector<19x128xf32>
    %c0_14 = arith.constant 0 : index
    %c0_15 = arith.constant 0 : index
    %37 = vector.load %arg5[%c0_14, %c0_15] : memref<19x128xf32, #tpu.memory_space<vmem>>, vector<19x128xf32>
    tpu.vector_store %arg5[%c0_14, %c0_15], %36 {strides = array<i32>} : memref<19x128xf32, #tpu.memory_space<vmem>>, vector<19x128xf32>,
    return
  }
  func.func @transform_0(%arg0: i32) -> (i32, i32) {
    %c0_i32 = arith.constant 0 : i32
    %c0_i32_0 = arith.constant 0 : i32
    return %c0_i32, %arg0 : i32, i32
  }
  func.func @transform_1(%arg0: i32) -> (i32, i32, i32) {
    %c0_i32 = arith.constant 0 : i32
    %c0_i32_0 = arith.constant 0 : i32
    %c0_i32_1 = arith.constant 0 : i32
    %c0_i32_2 = arith.constant 0 : i32
    return %c0_i32, %c0_i32_0, %c0_i32_1 : i32, i32, i32
  }
  func.func @transform_2(%arg0: i32) -> (i32, i32, i32) {
    %c0_i32 = arith.constant 0 : i32
    %c0_i32_0 = arith.constant 0 : i32
    %c0_i32_1 = arith.constant 0 : i32
    %c0_i32_2 = arith.constant 0 : i32
    return %c0_i32, %c0_i32_0, %c0_i32_1 : i32, i32, i32
  }
  func.func @transform_3(%arg0: i32) -> (i32, i32) {
    %c0_i32 = arith.constant 0 : i32
    %c0_i32_0 = arith.constant 0 : i32
    return %c0_i32, %arg0 : i32, i32
  }
  func.func @transform_4(%arg0: i32) -> (i32, i32) {
    %c0_i32 = arith.constant 0 : i32
    %c0_i32_0 = arith.constant 0 : i32
    return %c0_i32, %arg0 : i32, i32
  }
}

</mosaic_0001>

<llo_original>
// kernel: autoencoder_forward.1
$region0: #{autoencoder_forward.1}
  #allocation0 [shape = 'u32[]', space=smem, size = 0x4, offset = 0x4, fixed_abs, tag = 'smem constant byte address 0x4 - core index']
  #allocation1 [shape = 'u32[144,128]{1,0:T(1,128)}', space=vmem, size = 0x12000, scoped, tag = 'internal scratch']
  %s0 = inlined_call_operand.vmem [shape: f32[19,128], index: 0, kind: input, shape index: {}]
  %s1 = inlined_call_operand.vmem [shape: f32[4,32,32], index: 1, kind: input, shape index: {}]
  %s2 = inlined_call_operand.vmem [shape: f32[4,32,1], index: 2, kind: input, shape index: {}]
  %s3 = inlined_call_operand.vmem [shape: f32[8,128], index: 3, kind: output, shape index: {0}]
  %s4 = inlined_call_operand.vmem [shape: f32[19,128], index: 4, kind: output, shape index: {1}]
  %5 = xla_tuple %s3, %s4
  %s6 = sld [smem:[#allocation0]]
  $region30: #{autoencoder_forward.1} parent=0
    _
  %s8 = ssub.s32 1, %s6
  %s9 = scalar_select 0, %s8, %s6
  // Predicated region
  $region2: #{autoencoder_forward.1} parent=0 // pred_check
    _
  $region3: #{autoencoder_forward.1} parent=0 // pred_check_branch
    %11 = sbr.rel (0) target = $region5
  $region4: #{autoencoder_forward.1} parent=0 // pred_region
    _
  $region5: #{autoencoder_forward.1} parent=0 // pred_fallthru
    _
  // Predicated region
  $region6: #{autoencoder_forward.1} parent=0 // pred_check
    _
  $region7: #{autoencoder_forward.1} parent=0 // pred_check_branch
    %13 = sbr.rel (0) target = $region9
  $region8: #{autoencoder_forward.1} parent=0 // pred_region
    _
  $region9: #{autoencoder_forward.1} parent=0 // pred_fallthru
    _
  // Predicated region
  $region10: #{autoencoder_forward.1} parent=0 // pred_check
    _
  $region11: #{autoencoder_forward.1} parent=0 // pred_check_branch
    %15 = sbr.rel (0) target = $region13
  $region12: #{autoencoder_forward.1} parent=0 // pred_region
    _
  $region13: #{autoencoder_forward.1} parent=0 // pred_fallthru
    _
  %v16 = vld [vmem:[%s1] sm:$0xff]
  %v17 = vld [vmem:[%s1 + $0x8] sm:$0xff]
  %v18 = vld [vmem:[%s1 + $0x20] sm:$0xff]
  %v19 = vld [vmem:[%s1 + $0x40] sm:$0xff]
  %v20 = vld [vmem:[%s1 + $0x48] sm:$0xff]
  %v21 = vld [vmem:[%s1 + $0x60] sm:$0xff]
  %v22 = vld [vmem:[%s1 + $0x68] sm:$0xff]
  %v23 = vld [vmem:[%s1 + $0x70] sm:$0xff]
  %v24 = vld [vmem:[%s2] sm:$0xff]
  %v25 = vld [vmem:[%s2 + $0x8] sm:$0xff]
  %v26 = vld [vmem:[%s2 + $0x20] sm:$0xff]
  %v27 = vld [vmem:[%s2 + $0x40] sm:$0xff]
  %v28 = vld [vmem:[%s2 + $0x48] sm:$0xff]
  %v29 = vld [vmem:[%s2 + $0x60] sm:$0xff]
  %v30 = vld [vmem:[%s2 + $0x68] sm:$0xff]
  %v31 = vld [vmem:[%s2 + $0x70] sm:$0xff]
  %v32 = vld [vmem:[%s0] sm:$0xff]
  %v33 = vld [vmem:[%s0 + $0x8] sm:$0xff]
  %v34 = vld [vmem:[%s0 + $0x10] sm:$0x7]
  %36 = vset.pattern.permute.xlu0 0
  %37 = vperm.xlu0 %36, %v24
  %v38 = vpop.permute.xlu0 %37
  %41 = vset.pattern.permute.xlu0 0
  %42 = vperm.xlu0 %41, %v25
  %v43 = vpop.permute.xlu0 %42
  %vm45 = vcmask 154624
  %v47 = vsel %vm45, %v16, 0
  %v50 = vsel %vm45, %v17, 0
  %vm52 = vcmask 1042432
  %v54 = vsel %vm52, %v34, 0
  %56 = vmatprep.subr.mxu0 0.0
  %57 = vmatpush1.msra.mxu0 0.0
  %58 = vmatprep.subr.mxu0 0.0
  %59 = vmatpush1.msra.mxu0 0.0
  %60 = vmatprep.subr.mxu0 0.0
  %61 = vmatpush1.msra.mxu0 0.0
  %62 = vmatprep.subr.mxu0 0.0
  %63 = vmatpush1.msra.mxu0 0.0
  %64 = vmatprep.subr.mxu0 0.0
  %65 = vmatpush1.msra.mxu0 0.0
  %66 = vmatprep.subr.mxu0 0.0
  %67 = vmatpush1.msra.mxu0 0.0
  %68 = vmatprep.subr.mxu0 0.0
  %69 = vmatpush1.msra.mxu0 0.0
  %70 = vmatprep.subr.mxu0 0.0
  %71 = vmatpush1.msra.mxu0 0.0
  %72 = vmatprep.subr.mxu0 0.0
  %73 = vmatpush1.msra.mxu0 0.0
  %74 = vmatprep.subr.mxu0 0.0
  %75 = vmatpush1.msra.mxu0 0.0
  %76 = vmatprep.subr.mxu0 0.0
  %77 = vmatpush1.msra.mxu0 0.0
  %78 = vmatprep.subr.mxu0 0.0
  %79 = vmatpush1.msra.mxu0 0.0
  %80 = vmatprep.subr.mxu0 0.0
  %81 = vmatpush1.msra.mxu0 0.0
  %82 = vmatprep.subr.mxu0 0.0
  %83 = vmatpush1.msra.mxu0 %v54
  %84 = vmatprep.subr.mxu0 0.0
  %85 = vmatpush1.msra.mxu0 %v33
  %86 = vmatprep.subr.mxu0 0.0
  %87 = vmatpush1.msra.mxu0 %v32
  %88 = vmatprep.subr.mxu0 0.0
  %89 = vmatpush2.msra.mxu0 0.0
  %90 = vmatprep.subr.mxu0 0.0
  %91 = vmatpush2.msra.mxu0 0.0
  %92 = vmatprep.subr.mxu0 0.0
  %93 = vmatpush2.msra.mxu0 0.0
  %94 = vmatprep.subr.mxu0 0.0
  %95 = vmatpush2.msra.mxu0 0.0
  %96 = vmatprep.subr.mxu0 0.0
  %97 = vmatpush2.msra.mxu0 0.0
  %98 = vmatprep.subr.mxu0 0.0
  %99 = vmatpush2.msra.mxu0 0.0
  %100 = vmatprep.subr.mxu0 0.0
  %101 = vmatpush2.msra.mxu0 0.0
  %102 = vmatprep.subr.mxu0 0.0
  %103 = vmatpush2.msra.mxu0 0.0
  %104 = vmatprep.subr.mxu0 0.0
  %105 = vmatpush2.msra.mxu0 0.0
  %106 = vmatprep.subr.mxu0 0.0
  %107 = vmatpush2.msra.mxu0 0.0
  %108 = vmatprep.subr.mxu0 0.0
  %109 = vmatpush2.msra.mxu0 0.0
  %110 = vmatprep.subr.mxu0 0.0
  %111 = vmatpush2.msra.mxu0 0.0
  %112 = vmatprep.subr.mxu0 0.0
  %113 = vmatpush2.msra.mxu0 0.0
  %114 = vmatprep.subr.mxu0 0.0
  %115 = vmatpush2.msra.mxu0 0.0
  %116 = vmatprep.subr.mxu0 0.0
  %117 = vmatpush2.msra.mxu0 0.0
  %118 = vmatprep.subr.mxu0 0.0
  %119 = vmatpush2.msra.mxu0 0.0
  %120 = vmatprep.mubr.f32.mxu0 0.0
  %121 = vmatmul.mubr.f32.gmra.mxu0 %v47
  %v122 = vpop.f32.mrf.mxu0
  %v123 = vadd.f32 %v38, %v122
  %v124 = vpop.f32.mrf.mxu0
  %125 = vmatprep.mubr.f32.mxu0 0.0
  %126 = vmatmul.mubr.f32.gmra.mxu0 %v50
  %v127 = vpop.f32.mrf.mxu0
  %v128 = vadd.f32 %v43, %v127
  %v129 = vpop.f32.mrf.mxu0
  %130 = vdwg.mxu0
  %v131 = vmax.f32 %v123, 0.0
  %v132 = vmax.f32 %v128, 0.0
  %134 = vset.pattern.permute.xlu0 0
  %135 = vperm.xlu0 %134, %v26
  %v136 = vpop.permute.xlu0 %135
  %vm138 = vcmask 130048
  %v140 = vsel %vm138, %v18, 0
  %142 = vmatprep.subr.mxu0 0.0
  %143 = vmatpush1.msra.mxu0 0.0
  %144 = vmatprep.subr.mxu0 0.0
  %145 = vmatpush1.msra.mxu0 0.0
  %146 = vmatprep.subr.mxu0 0.0
  %147 = vmatpush1.msra.mxu0 0.0
  %148 = vmatprep.subr.mxu0 0.0
  %149 = vmatpush1.msra.mxu0 0.0
  %150 = vmatprep.subr.mxu0 0.0
  %151 = vmatpush1.msra.mxu0 0.0
  %152 = vmatprep.subr.mxu0 0.0
  %153 = vmatpush1.msra.mxu0 0.0
  %154 = vmatprep.subr.mxu0 0.0
  %155 = vmatpush1.msra.mxu0 0.0
  %156 = vmatprep.subr.mxu0 0.0
  %157 = vmatpush1.msra.mxu0 0.0
  %158 = vmatprep.subr.mxu0 0.0
  %159 = vmatpush1.msra.mxu0 0.0
  %160 = vmatprep.subr.mxu0 0.0
  %161 = vmatpush1.msra.mxu0 0.0
  %162 = vmatprep.subr.mxu0 0.0
  %163 = vmatpush1.msra.mxu0 0.0
  %164 = vmatprep.subr.mxu0 0.0
  %165 = vmatpush1.msra.mxu0 0.0
  %166 = vmatprep.subr.mxu0 0.0
  %167 = vmatpush1.msra.mxu0 0.0
  %168 = vmatprep.subr.mxu0 0.0
  %169 = vmatpush1.msra.mxu0 0.0
  %170 = vmatprep.subr.mxu0 0.0
  %171 = vmatpush1.msra.mxu0 %v132
  %172 = vmatprep.subr.mxu0 0.0
  %173 = vmatpush1.msra.mxu0 %v131
  %174 = vmatprep.subr.mxu0 0.0
  %175 = vmatpush2.msra.mxu0 0.0
  %176 = vmatprep.subr.mxu0 0.0
  %177 = vmatpush2.msra.mxu0 0.0
  %178 = vmatprep.subr.mxu0 0.0
  %179 = vmatpush2.msra.mxu0 0.0
  %180 = vmatprep.subr.mxu0 0.0
  %181 = vmatpush2.msra.mxu0 0.0
  %182 = vmatprep.subr.mxu0 0.0
  %183 = vmatpush2.msra.mxu0 0.0
  %184 = vmatprep.subr.mxu0 0.0
  %185 = vmatpush2.msra.mxu0 0.0
  %186 = vmatprep.subr.mxu0 0.0
  %187 = vmatpush2.msra.mxu0 0.0
  %188 = vmatprep.subr.mxu0 0.0
  %189 = vmatpush2.msra.mxu0 0.0
  %190 = vmatprep.subr.mxu0 0.0
  %191 = vmatpush2.msra.mxu0 0.0
  %192 = vmatprep.subr.mxu0 0.0
  %193 = vmatpush2.msra.mxu0 0.0
  %194 = vmatprep.subr.mxu0 0.0
  %195 = vmatpush2.msra.mxu0 0.0
  %196 = vmatprep.subr.mxu0 0.0
  %197 = vmatpush2.msra.mxu0 0.0
  %198 = vmatprep.subr.mxu0 0.0
  %199 = vmatpush2.msra.mxu0 0.0
  %200 = vmatprep.subr.mxu0 0.0
  %201 = vmatpush2.msra.mxu0 0.0
  %202 = vmatprep.subr.mxu0 0.0
  %203 = vmatpush2.msra.mxu0 0.0
  %204 = vmatprep.subr.mxu0 0.0
  %205 = vmatpush2.msra.mxu0 0.0
  %206 = vmatprep.mubr.f32.mxu0 0.0
  %207 = vmatmul.mubr.f32.gmra.mxu0 %v140
  %v208 = vpop.f32.mrf.mxu0
  %v209 = vadd.f32 %v136, %v208
  %v210 = vpop.f32.mrf.mxu0
  %211 = vdwg.mxu0
  %212 = vst [vmem:[%s3] sm:$0xff] %v209
  %214 = vset.pattern.permute.xlu0 0
  %215 = vperm.xlu0 %214, %v27
  %v216 = vpop.permute.xlu0 %215
  %219 = vset.pattern.permute.xlu0 0
  %220 = vperm.xlu0 %219, %v28
  %v221 = vpop.permute.xlu0 %220
  %vm223 = vcmask 64512
  %v225 = vsel %vm223, %v19, 0
  %v228 = vsel %vm223, %v20, 0
  %230 = vmatprep.subr.mxu0 0.0
  %231 = vmatpush1.msra.mxu0 0.0
  %232 = vmatprep.subr.mxu0 0.0
  %233 = vmatpush1.msra.mxu0 0.0
  %234 = vmatprep.subr.mxu0 0.0
  %235 = vmatpush1.msra.mxu0 0.0
  %236 = vmatprep.subr.mxu0 0.0
  %237 = vmatpush1.msra.mxu0 0.0
  %238 = vmatprep.subr.mxu0 0.0
  %239 = vmatpush1.msra.mxu0 0.0
  %240 = vmatprep.subr.mxu0 0.0
  %241 = vmatpush1.msra.mxu0 0.0
  %242 = vmatprep.subr.mxu0 0.0
  %243 = vmatpush1.msra.mxu0 0.0
  %244 = vmatprep.subr.mxu0 0.0
  %245 = vmatpush1.msra.mxu0 0.0
  %246 = vmatprep.subr.mxu0 0.0
  %247 = vmatpush1.msra.mxu0 0.0
  %248 = vmatprep.subr.mxu0 0.0
  %249 = vmatpush1.msra.mxu0 0.0
  %250 = vmatprep.subr.mxu0 0.0
  %251 = vmatpush1.msra.mxu0 0.0
  %252 = vmatprep.subr.mxu0 0.0
  %253 = vmatpush1.msra.mxu0 0.0
  %254 = vmatprep.subr.mxu0 0.0
  %255 = vmatpush1.msra.mxu0 0.0
  %256 = vmatprep.subr.mxu0 0.0
  %257 = vmatpush1.msra.mxu0 0.0
  %258 = vmatprep.subr.mxu0 0.0
  %259 = vmatpush1.msra.mxu0 0.0
  %260 = vmatprep.subr.mxu0 0.0
  %261 = vmatpush1.msra.mxu0 %v209
  %262 = vmatprep.subr.mxu0 0.0
  %263 = vmatpush2.msra.mxu0 0.0
  %264 = vmatprep.subr.mxu0 0.0
  %265 = vmatpush2.msra.mxu0 0.0
  %266 = vmatprep.subr.mxu0 0.0
  %267 = vmatpush2.msra.mxu0 0.0
  %268 = vmatprep.subr.mxu0 0.0
  %269 = vmatpush2.msra.mxu0 0.0
  %270 = vmatprep.subr.mxu0 0.0
  %271 = vmatpush2.msra.mxu0 0.0
  %272 = vmatprep.subr.mxu0 0.0
  %273 = vmatpush2.msra.mxu0 0.0
  %274 = vmatprep.subr.mxu0 0.0
  %275 = vmatpush2.msra.mxu0 0.0
  %276 = vmatprep.subr.mxu0 0.0
  %277 = vmatpush2.msra.mxu0 0.0
  %278 = vmatprep.subr.mxu0 0.0
  %279 = vmatpush2.msra.mxu0 0.0
  %280 = vmatprep.subr.mxu0 0.0
  %281 = vmatpush2.msra.mxu0 0.0
  %282 = vmatprep.subr.mxu0 0.0
  %283 = vmatpush2.msra.mxu0 0.0
  %284 = vmatprep.subr.mxu0 0.0
  %285 = vmatpush2.msra.mxu0 0.0
  %286 = vmatprep.subr.mxu0 0.0
  %287 = vmatpush2.msra.mxu0 0.0
  %288 = vmatprep.subr.mxu0 0.0
  %289 = vmatpush2.msra.mxu0 0.0
  %290 = vmatprep.subr.mxu0 0.0
  %291 = vmatpush2.msra.mxu0 0.0
  %292 = vmatprep.subr.mxu0 0.0
  %293 = vmatpush2.msra.mxu0 0.0
  %294 = vmatprep.mubr.f32.mxu0 0.0
  %295 = vmatmul.mubr.f32.gmra.mxu0 %v225
  %v296 = vpop.f32.mrf.mxu0
  %v297 = vadd.f32 %v216, %v296
  %v298 = vpop.f32.mrf.mxu0
  %299 = vmatprep.mubr.f32.mxu0 0.0
  %300 = vmatmul.mubr.f32.gmra.mxu0 %v228
  %v301 = vpop.f32.mrf.mxu0
  %v302 = vadd.f32 %v221, %v301
  %v303 = vpop.f32.mrf.mxu0
  %304 = vdwg.mxu0
  %v305 = vmax.f32 %v297, 0.0
  %v306 = vmax.f32 %v302, 0.0
  %308 = vset.pattern.permute.xlu0 0
  %309 = vperm.xlu0 %308, %v29
  %v310 = vpop.permute.xlu0 %309
  %313 = vset.pattern.permute.xlu0 0
  %314 = vperm.xlu0 %313, %v30
  %v315 = vpop.permute.xlu0 %314
  %318 = vset.pattern.permute.xlu0 0
  %319 = vperm.xlu0 %318, %v31
  %v320 = vpop.permute.xlu0 %319
  %v323 = vsel %vm138, %v21, 0
  %v326 = vsel %vm138, %v22, 0
  %v329 = vsel %vm138, %v23, 0
  %331 = vmatprep.subr.mxu0 0.0
  %332 = vmatpush1.msra.mxu0 0.0
  %333 = vmatprep.subr.mxu0 0.0
  %334 = vmatpush1.msra.mxu0 0.0
  %335 = vmatprep.subr.mxu0 0.0
  %336 = vmatpush1.msra.mxu0 0.0
  %337 = vmatprep.subr.mxu0 0.0
  %338 = vmatpush1.msra.mxu0 0.0
  %339 = vmatprep.subr.mxu0 0.0
  %340 = vmatpush1.msra.mxu0 0.0
  %341 = vmatprep.subr.mxu0 0.0
  %342 = vmatpush1.msra.mxu0 0.0
  %343 = vmatprep.subr.mxu0 0.0
  %344 = vmatpush1.msra.mxu0 0.0
  %345 = vmatprep.subr.mxu0 0.0
  %346 = vmatpush1.msra.mxu0 0.0
  %347 = vmatprep.subr.mxu0 0.0
  %348 = vmatpush1.msra.mxu0 0.0
  %349 = vmatprep.subr.mxu0 0.0
  %350 = vmatpush1.msra.mxu0 0.0
  %351 = vmatprep.subr.mxu0 0.0
  %352 = vmatpush1.msra.mxu0 0.0
  %353 = vmatprep.subr.mxu0 0.0
  %354 = vmatpush1.msra.mxu0 0.0
  %355 = vmatprep.subr.mxu0 0.0
  %356 = vmatpush1.msra.mxu0 0.0
  %357 = vmatprep.subr.mxu0 0.0
  %358 = vmatpush1.msra.mxu0 0.0
  %359 = vmatprep.subr.mxu0 0.0
  %360 = vmatpush1.msra.mxu0 %v306
  %361 = vmatprep.subr.mxu0 0.0
  %362 = vmatpush1.msra.mxu0 %v305
  %363 = vmatprep.subr.mxu0 0.0
  %364 = vmatpush2.msra.mxu0 0.0
  %365 = vmatprep.subr.mxu0 0.0
  %366 = vmatpush2.msra.mxu0 0.0
  %367 = vmatprep.subr.mxu0 0.0
  %368 = vmatpush2.msra.mxu0 0.0
  %369 = vmatprep.subr.mxu0 0.0
  %370 = vmatpush2.msra.mxu0 0.0
  %371 = vmatprep.subr.mxu0 0.0
  %372 = vmatpush2.msra.mxu0 0.0
  %373 = vmatprep.subr.mxu0 0.0
  %374 = vmatpush2.msra.mxu0 0.0
  %375 = vmatprep.subr.mxu0 0.0
  %376 = vmatpush2.msra.mxu0 0.0
  %377 = vmatprep.subr.mxu0 0.0
  %378 = vmatpush2.msra.mxu0 0.0
  %379 = vmatprep.subr.mxu0 0.0
  %380 = vmatpush2.msra.mxu0 0.0
  %381 = vmatprep.subr.mxu0 0.0
  %382 = vmatpush2.msra.mxu0 0.0
  %383 = vmatprep.subr.mxu0 0.0
  %384 = vmatpush2.msra.mxu0 0.0
  %385 = vmatprep.subr.mxu0 0.0
  %386 = vmatpush2.msra.mxu0 0.0
  %387 = vmatprep.subr.mxu0 0.0
  %388 = vmatpush2.msra.mxu0 0.0
  %389 = vmatprep.subr.mxu0 0.0
  %390 = vmatpush2.msra.mxu0 0.0
  %391 = vmatprep.subr.mxu0 0.0
  %392 = vmatpush2.msra.mxu0 0.0
  %393 = vmatprep.subr.mxu0 0.0
  %394 = vmatpush2.msra.mxu0 0.0
  %395 = vmatprep.mubr.f32.mxu0 0.0
  %396 = vmatmul.mubr.f32.gmra.mxu0 %v323
  %v397 = vpop.f32.mrf.mxu0
  %v398 = vadd.f32 %v310, %v397
  %v399 = vpop.f32.mrf.mxu0
  %400 = vmatprep.mubr.f32.mxu0 0.0
  %401 = vmatmul.mubr.f32.gmra.mxu0 %v326
  %v402 = vpop.f32.mrf.mxu0
  %v403 = vadd.f32 %v315, %v402
  %v404 = vpop.f32.mrf.mxu0
  %405 = vmatprep.mubr.f32.mxu0 0.0
  %406 = vmatmul.mubr.f32.gmra.mxu0 %v329
  %v407 = vpop.f32.mrf.mxu0
  %v408 = vadd.f32 %v320, %v407
  %v409 = vpop.f32.mrf.mxu0
  %410 = vdwg.mxu0
  %v411 = vtanh.pop %v398
  %v412 = vtanh.pop %v403
  %v413 = vtanh.pop %v408
  %414 = vst [vmem:[%s4] sm:$0xff] %v411
  %415 = vst [vmem:[%s4 + $0x8] sm:$0xff] %v412
  %416 = vst [vmem:[%s4 + $0x10] sm:$0x7] %v413
  // Predicated region
  $region14: #{autoencoder_forward.1} parent=0 // pred_check
    _
  $region15: #{autoencoder_forward.1} parent=0 // pred_check_branch
    %418 = sbr.rel (0) target = $region17
  $region16: #{autoencoder_forward.1} parent=0 // pred_region
    _
  $region17: #{autoencoder_forward.1} parent=0 // pred_fallthru
    _
  // Predicated region
  $region18: #{autoencoder_forward.1} parent=0 // pred_check
    _
  $region19: #{autoencoder_forward.1} parent=0 // pred_check_branch
    %420 = sbr.rel (0) target = $region21
  $region20: #{autoencoder_forward.1} parent=0 // pred_region
    _
  $region21: #{autoencoder_forward.1} parent=0 // pred_fallthru
    _
  // Predicated region
  $region22: #{autoencoder_forward.1} parent=0 // pred_check
    _
  $region23: #{autoencoder_forward.1} parent=0 // pred_check_branch
    %422 = sbr.rel (0) target = $region25
  $region24: #{autoencoder_forward.1} parent=0 // pred_region
    _
  $region25: #{autoencoder_forward.1} parent=0 // pred_fallthru
    _
  // Predicated region
  $region26: #{autoencoder_forward.1} parent=0 // pred_check
    _
  $region27: #{autoencoder_forward.1} parent=0 // pred_check_branch
    %424 = sbr.rel (0) target = $region29
  $region28: #{autoencoder_forward.1} parent=0 // pred_region
    _
  $region29: #{autoencoder_forward.1} parent=0 // pred_fallthru
    _

</llo_original>
